<compile_context>
chip_gen: v7x
topology: tpu7x:2x2x1
jax: 0.10.0
libtpu: 0.0.40
codegen_flags: <defaults>
</compile_context>

<pallas_src>
import jax
import jax.numpy as jnp
from jax.experimental import pallas as pl
from jax.experimental.pallas import tpu as pltpu

FEATURES = 256     # module default features=256 (fills 256-wide MXU K on v6e/v7x)
VOCAB_SIZE = 512   # stand-in for pickle-loaded vocab_size (multiple of 256)
MAX_LENGTH = 8     # stand-in for pickle-loaded max_length
TILE_V = VOCAB_SIZE  # single vocab tile -> grid=(1,), no per-step overhead


def _caption_head_kernel(x_ref, w1_ref, b1_ref, w2_ref, b2_ref, out_ref):
    """Fused MLP head: linear_1 -> ReLU -> linear_2 for the (single) vocab tile.

    x_ref  : (Bp, F)       bf16  -- merged image+text feature (prefix done in wrapper)
    w1_ref : (F, F)        bf16,  b1_ref: (1, F)      f32
    w2_ref : (F, TILE_V)   bf16,  b2_ref: (1, TILE_V) f32
    out_ref: (Bp, TILE_V)  f32
    """
    h = jnp.dot(x_ref[...], w1_ref[...],
                preferred_element_type=jnp.float32) + b1_ref[...]   # linear_1 (MXU, f32 acc)
    h = jnp.maximum(h, 0.0)                                         # ReLU (f32 VPU)
    out_ref[...] = jnp.dot(h.astype(jnp.bfloat16), w2_ref[...],
                           preferred_element_type=jnp.float32) + b2_ref[...]  # linear_2


@jax.jit
def bert_captioning_forward(image, sequence, params):
    """image: (B, C, H, W) f32, sequence: (B, max_length) i32 -> (B, vocab) f32."""
    B, C, H, W = image.shape

    # Image-branch glue: global spatial mean-pool + C->F projection (K=C is
    # degenerate for the MXU, so this tiny matmul stays in XLA).
    pooled = jnp.mean(image.astype(jnp.float32), axis=(2, 3))            # (B, C)
    img_feat = pooled @ params["w_img"] + params["b_img"]                # (B, F) f32

    # Text-branch glue: embedding lookup + mean pool over the sequence.
    emb = jnp.take(params["embedding"], sequence, axis=0)                # (B, L, F)
    txt_feat = jnp.mean(emb.astype(jnp.float32), axis=1)                 # (B, F)

    # Merge the two branches (shared prefix hoisted out of the kernel).
    merged = (img_feat + txt_feat).astype(jnp.bfloat16)                  # (B, F) bf16

    # Pad batch to a multiple of 16 so packed bf16 vregs (16x128) are full.
    B_pad = ((B + 15) // 16) * 16
    merged_p = jnp.pad(merged, ((0, B_pad - B), (0, 0)))

    const = lambda i: (0, 0)   # single grid step: everything resident in VMEM

    out = pl.pallas_call(
        _caption_head_kernel,
        out_shape=jax.ShapeDtypeStruct((B_pad, VOCAB_SIZE), jnp.float32),
        grid=(VOCAB_SIZE // TILE_V,),                       # == (1,)
        in_specs=[
            pl.BlockSpec((B_pad, FEATURES), const),         # merged feature
            pl.BlockSpec((FEATURES, FEATURES), const),      # w1
            pl.BlockSpec((1, FEATURES), const),             # b1
            pl.BlockSpec((FEATURES, TILE_V), const),        # w2
            pl.BlockSpec((1, TILE_V), const),               # b2
        ],
        out_specs=pl.BlockSpec((B_pad, TILE_V), const),
        compiler_params=pltpu.CompilerParams(
            dimension_semantics=("arbitrary",),             # one tile; nothing to shard
        ),
    )(merged_p, params["w1"], params["b1"], params["w2"], params["b2"])
    return out[:B]


def init_params(key, channels):
    """Deterministic parameter init (shapes follow the module's __init__)."""
    ks = jax.random.split(key, 6)
    scale = 0.02
    return {
        # stand-in image_embed_net projection: Linear(C -> features), stored (in, out)
        "w_img": scale * jax.random.normal(ks[0], (channels, FEATURES), jnp.float32),
        "b_img": jnp.zeros((1, FEATURES), jnp.float32),
        # stand-in text_embed_net: Embedding(vocab_size, features)
        "embedding": scale * jax.random.normal(ks[1], (VOCAB_SIZE, FEATURES), jnp.float32),
        # linear_1: Linear(features, features), stored (in, out)
        "w1": (scale * jax.random.normal(ks[2], (FEATURES, FEATURES), jnp.float32)
               ).astype(jnp.bfloat16),
        "b1": scale * jax.random.normal(ks[3], (1, FEATURES), jnp.float32),
        # linear_2: Linear(features, vocab_size), stored (in, out)
        # TODO(synk): at real vocab (~30k) quantize w2 (int8 on v5e/v6e, fp8 on v7x)
        # to halve the dominant HBM stream; kept bf16 here at this toy vocab.
        "w2": (scale * jax.random.normal(ks[4], (FEATURES, VOCAB_SIZE), jnp.float32)
               ).astype(jnp.bfloat16),
        "b2": scale * jax.random.normal(ks[5], (1, VOCAB_SIZE), jnp.float32),
    }


if __name__ == "__main__":
    key = jax.random.PRNGKey(0)
    k_img, k_seq, k_par = jax.random.split(key, 3)

    B, C, H, W = 2, 4, 16, 16
    image = jax.random.normal(k_img, (B, C, H, W), jnp.float32)
    sequence = jax.random.randint(k_seq, (B, MAX_LENGTH), 0, VOCAB_SIZE, jnp.int32)
    params = init_params(k_par, C)

    logits = bert_captioning_forward(image, sequence, params)
    jax.block_until_ready(logits)

    # Pure-JAX reference of the same math (same bf16 cast points, f32 accumulation).
    pooled = jnp.mean(image, axis=(2, 3))
    img_feat = pooled @ params["w_img"] + params["b_img"]
    txt = jnp.mean(jnp.take(params["embedding"], sequence, axis=0), axis=1)
    merged = (img_feat + txt).astype(jnp.bfloat16)
    h = jnp.maximum(jnp.dot(merged, params["w1"],
                            preferred_element_type=jnp.float32) + params["b1"], 0.0)
    ref = jnp.dot(h.astype(jnp.bfloat16), params["w2"],
                  preferred_element_type=jnp.float32) + params["b2"]

    assert logits.shape == (B, VOCAB_SIZE)
    assert jnp.allclose(logits, ref, atol=2e-2, rtol=2e-2)

    print("KERNEL_OK")
</pallas_src>

<mosaic_0001>
module attributes {stable_mosaic.version = 11 : i64} {
  func.func @_caption_head_kernel(%arg0: i32, %arg1: memref<16x256xbf16, #tpu.memory_space<vmem>>, %arg2: memref<256x256xbf16, #tpu.memory_space<vmem>>, %arg3: memref<1x256xf32, #tpu.memory_space<vmem>>, %arg4: memref<256x512xbf16, #tpu.memory_space<vmem>>, %arg5: memref<1x512xf32, #tpu.memory_space<vmem>>, %arg6: memref<16x512xf32, #tpu.memory_space<vmem>>) attributes {dimension_semantics = [#tpu.dimension_semantics<arbitrary>], iteration_bounds = array<i64: 1>, scalar_prefetch = 0 : i64, scratch_operands = 0 : i64, tpu.core_type = #tpu.core_type<tc>, window_params = [{pipeline_mode = #tpu.pipeline_mode<synchronous>, transform_indices = @transform_0, window_bounds = array<i64: 16, 256>}, {pipeline_mode = #tpu.pipeline_mode<synchronous>, transform_indices = @transform_1, window_bounds = array<i64: 256, 256>}, {pipeline_mode = #tpu.pipeline_mode<synchronous>, transform_indices = @transform_2, window_bounds = array<i64: 1, 256>}, {pipeline_mode = #tpu.pipeline_mode<synchronous>, transform_indices = @transform_3, window_bounds = array<i64: 256, 512>}, {pipeline_mode = #tpu.pipeline_mode<synchronous>, transform_indices = @transform_4, window_bounds = array<i64: 1, 512>}, {pipeline_mode = #tpu.pipeline_mode<synchronous>, transform_indices = @transform_5, window_bounds = array<i64: 16, 512>}]} {
    %c0 = arith.constant 0 : index
    %c0_0 = arith.constant 0 : index
    %0 = vector.load %arg1[%c0, %c0_0] : memref<16x256xbf16, #tpu.memory_space<vmem>>, vector<16x256xbf16>
    %c0_1 = arith.constant 0 : index
    %c0_2 = arith.constant 0 : index
    %1 = vector.load %arg2[%c0_1, %c0_2] : memref<256x256xbf16, #tpu.memory_space<vmem>>, vector<256x256xbf16>
    %cst = arith.constant dense<0.000000e+00> : vector<16x256xf32>
    %2 = tpu.matmul %0, %1, %cst {dimension_numbers = #tpu.dot_dimension_numbers<[1], [0], [0], [1], [0, 0, 1, 1], [], []>} : vector<16x256xbf16>, vector<256x256xbf16>, vector<16x256xf32> -> vector<16x256xf32>
    %c0_3 = arith.constant 0 : index
    %c0_4 = arith.constant 0 : index
    %3 = vector.load %arg3[%c0_3, %c0_4] : memref<1x256xf32, #tpu.memory_space<vmem>>, vector<1x256xf32>
    %4 = vector.broadcast %3 : vector<1x256xf32> to vector<16x256xf32>
    %5 = arith.addf %2, %4 : vector<16x256xf32>
    %cst_5 = arith.constant 0.000000e+00 : f32
    %6 = vector.broadcast %cst_5 : f32 to vector<16x256xf32>
    %7 = arith.maximumf %5, %6 : vector<16x256xf32>
    %8 = arith.truncf %7 : vector<16x256xf32> to vector<16x256xbf16>
    %c0_6 = arith.constant 0 : index
    %c0_7 = arith.constant 0 : index
    %9 = vector.load %arg4[%c0_6, %c0_7] : memref<256x512xbf16, #tpu.memory_space<vmem>>, vector<256x512xbf16>
    %cst_8 = arith.constant dense<0.000000e+00> : vector<16x512xf32>
    %10 = tpu.matmul %8, %9, %cst_8 {dimension_numbers = #tpu.dot_dimension_numbers<[1], [0], [0], [1], [0, 0, 1, 1], [], []>} : vector<16x256xbf16>, vector<256x512xbf16>, vector<16x512xf32> -> vector<16x512xf32>
    %c0_9 = arith.constant 0 : index
    %c0_10 = arith.constant 0 : index
    %11 = vector.load %arg5[%c0_9, %c0_10] : memref<1x512xf32, #tpu.memory_space<vmem>>, vector<1x512xf32>
    %12 = vector.broadcast %11 : vector<1x512xf32> to vector<16x512xf32>
    %13 = arith.addf %10, %12 : vector<16x512xf32>
    %c0_11 = arith.constant 0 : index
    %c0_12 = arith.constant 0 : index
    %14 = vector.load %arg6[%c0_11, %c0_12] : memref<16x512xf32, #tpu.memory_space<vmem>>, vector<16x512xf32>
    tpu.vector_store %arg6[%c0_11, %c0_12], %13 {strides = array<i32>} : memref<16x512xf32, #tpu.memory_space<vmem>>, vector<16x512xf32>,
    return
  }
  func.func @transform_0(%arg0: i32) -> (i32, i32) {
    %c0_i32 = arith.constant 0 : i32
    %c0_i32_0 = arith.constant 0 : i32
    %c0_i32_1 = arith.constant 0 : i32
    return %c0_i32, %c0_i32_0 : i32, i32
  }
  func.func @transform_1(%arg0: i32) -> (i32, i32) {
    %c0_i32 = arith.constant 0 : i32
    %c0_i32_0 = arith.constant 0 : i32
    %c0_i32_1 = arith.constant 0 : i32
    return %c0_i32, %c0_i32_0 : i32, i32
  }
  func.func @transform_2(%arg0: i32) -> (i32, i32) {
    %c0_i32 = arith.constant 0 : i32
    %c0_i32_0 = arith.constant 0 : i32
    %c0_i32_1 = arith.constant 0 : i32
    return %c0_i32, %c0_i32_0 : i32, i32
  }
  func.func @transform_3(%arg0: i32) -> (i32, i32) {
    %c0_i32 = arith.constant 0 : i32
    %c0_i32_0 = arith.constant 0 : i32
    %c0_i32_1 = arith.constant 0 : i32
    return %c0_i32, %c0_i32_0 : i32, i32
  }
  func.func @transform_4(%arg0: i32) -> (i32, i32) {
    %c0_i32 = arith.constant 0 : i32
    %c0_i32_0 = arith.constant 0 : i32
    %c0_i32_1 = arith.constant 0 : i32
    return %c0_i32, %c0_i32_0 : i32, i32
  }
  func.func @transform_5(%arg0: i32) -> (i32, i32) {
    %c0_i32 = arith.constant 0 : i32
    %c0_i32_0 = arith.constant 0 : i32
    %c0_i32_1 = arith.constant 0 : i32
    return %c0_i32, %c0_i32_0 : i32, i32
  }
}

</mosaic_0001>

<llo_original>
// kernel: bert_captioning_forward.1
$region0: #{bert_captioning_forward.1}
  #allocation0 [shape = 'u32[]', space=smem, size = 0x4, offset = 0x4, fixed_abs, tag = 'smem constant byte address 0x4 - core index']
  #allocation1 [shape = 'u32[144,128]{1,0:T(1,128)}', space=vmem, size = 0x12000, scoped, tag = 'internal scratch']
  %s0 = inlined_call_operand.vmem [shape: bf16[16,256], index: 0, kind: input, shape index: {}]
  %s1 = inlined_call_operand.hbm [shape: bf16[256,256], index: 1, kind: input, shape index: {}]
  %s2 = inlined_call_operand.vmem [shape: f32[1,256], index: 2, kind: input, shape index: {}]
  %s3 = inlined_call_operand.vmem [shape: bf16[256,512], index: 3, kind: input, shape index: {}]
  %s4 = inlined_call_operand.vmem [shape: f32[1,512], index: 4, kind: input, shape index: {}]
  %s5 = inlined_call_operand.vmem [shape: f32[16,512], index: 5, kind: output, shape index: {}]
  %s6 = sld [smem:[#allocation0]]
  $region34: #{bert_captioning_forward.1} parent=0
    _
  %s8 = ssub.s32 1, %s6
  %s9 = scalar_select 0, %s8, %s6
  $region1: #{bert_captioning_forward.1} parent=0
    #allocation2 [shape = 'u8[131072]{0}', space=vmem, size = 0x20000, scoped, tag = 'input window, operand 1, single buffered']
    #allocation3 [shape = 's32[1]{0}', space=sflag, size = 0x4, scoped, tag = 'scoped memory for bert_captioning_forward.1']
    %10 = vsyncpa [#allocation3], 0
    // Predicated region
    $region2: #{bert_captioning_forward.1} parent=1 // pred_check
      _
    $region3: #{bert_captioning_forward.1} parent=1 // pred_check_branch
      %12 = sbr.rel (0) target = $region5
    $region4: #{bert_captioning_forward.1} parent=1 // pred_region
      _
    $region5: #{bert_captioning_forward.1} parent=1 // pred_fallthru
      _
    // Predicated region
    $region6: #{bert_captioning_forward.1} parent=1 // pred_check
      _
    $region7: #{bert_captioning_forward.1} parent=1 // pred_check_branch
      %14 = sbr.rel (0) target = $region9
    $region8: #{bert_captioning_forward.1} parent=1 // pred_region
      %s16 = ssub.s32 4096, 4096
      %17 = vsyncadd [#allocation3], %s16
      %s18 = sshll.u32 [#allocation2], 4
      %s19 = int_to_ptr.vmem [resolvable:$true] %s18
      %24 = dma.hbm_to_vmem [thread:$0]  %s1, 4096, %s19, [#allocation3], 128, 128, 8
    $region9: #{bert_captioning_forward.1} parent=1 // pred_fallthru
      _
    // Predicated region
    $region10: #{bert_captioning_forward.1} parent=1 // pred_check
      _
    $region11: #{bert_captioning_forward.1} parent=1 // pred_check_branch
      %26 = sbr.rel (0) target = $region13
    $region12: #{bert_captioning_forward.1} parent=1 // pred_region
      _
    $region13: #{bert_captioning_forward.1} parent=1 // pred_fallthru
      _
    // Predicated region
    $region14: #{bert_captioning_forward.1} parent=1 // pred_check
      _
    $region15: #{bert_captioning_forward.1} parent=1 // pred_check_branch
      %28 = sbr.rel (0) target = $region17
    $region16: #{bert_captioning_forward.1} parent=1 // pred_region
      _
    $region17: #{bert_captioning_forward.1} parent=1 // pred_fallthru
      _
    // Predicated region
    $region18: #{bert_captioning_forward.1} parent=1 // pred_check
      _
    $region19: #{bert_captioning_forward.1} parent=1 // pred_check_branch
      %30 = sbr.rel (0) target = $region21
    $region20: #{bert_captioning_forward.1} parent=1 // pred_region
      _
    $region21: #{bert_captioning_forward.1} parent=1 // pred_fallthru
      _
    // Predicated region
    $region22: #{bert_captioning_forward.1} parent=1 // pred_check
      _
    $region23: #{bert_captioning_forward.1} parent=1 // pred_check_branch
      %32 = sbr.rel (0) target = $region25
    $region24: #{bert_captioning_forward.1} parent=1 // pred_region
      %33 = dma.done [#allocation3], 4096
    $region25: #{bert_captioning_forward.1} parent=1 // pred_fallthru
      _
    %v34 = vld [vmem:[%s0] sm:$0xff]
    %v35 = vld [vmem:[%s0 + $0x8] sm:$0xff]
    %v36 = vld [vmem:[#allocation2] sm:$0xff]
    %v37 = vld [vmem:[#allocation2 + $0x8] sm:$0xff]
    %v38 = vld [vmem:[#allocation2 + $0x10] sm:$0xff]
    %v39 = vld [vmem:[#allocation2 + $0x18] sm:$0xff]
    %v40 = vld [vmem:[#allocation2 + $0x20] sm:$0xff]
    %v41 = vld [vmem:[#allocation2 + $0x28] sm:$0xff]
    %v42 = vld [vmem:[#allocation2 + $0x30] sm:$0xff]
    %v43 = vld [vmem:[#allocation2 + $0x38] sm:$0xff]
    %v44 = vld [vmem:[#allocation2 + $0x40] sm:$0xff]
    %v45 = vld [vmem:[#allocation2 + $0x48] sm:$0xff]
    %v46 = vld [vmem:[#allocation2 + $0x50] sm:$0xff]
    %v47 = vld [vmem:[#allocation2 + $0x58] sm:$0xff]
    %v48 = vld [vmem:[#allocation2 + $0x60] sm:$0xff]
    %v49 = vld [vmem:[#allocation2 + $0x68] sm:$0xff]
    %v50 = vld [vmem:[#allocation2 + $0x70] sm:$0xff]
    %v51 = vld [vmem:[#allocation2 + $0x78] sm:$0xff]
    %v52 = vld [vmem:[#allocation2 + $0x80] sm:$0xff]
    %v53 = vld [vmem:[#allocation2 + $0x88] sm:$0xff]
    %v54 = vld [vmem:[#allocation2 + $0x90] sm:$0xff]
    %v55 = vld [vmem:[#allocation2 + $0x98] sm:$0xff]
    %v56 = vld [vmem:[#allocation2 + $0xa0] sm:$0xff]
    %v57 = vld [vmem:[#allocation2 + $0xa8] sm:$0xff]
    %v58 = vld [vmem:[#allocation2 + $0xb0] sm:$0xff]
    %v59 = vld [vmem:[#allocation2 + $0xb8] sm:$0xff]
    %v60 = vld [vmem:[#allocation2 + $0xc0] sm:$0xff]
    %v61 = vld [vmem:[#allocation2 + $0xc8] sm:$0xff]
    %v62 = vld [vmem:[#allocation2 + $0xd0] sm:$0xff]
    %v63 = vld [vmem:[#allocation2 + $0xd8] sm:$0xff]
    %v64 = vld [vmem:[#allocation2 + $0xe0] sm:$0xff]
    %v65 = vld [vmem:[#allocation2 + $0xe8] sm:$0xff]
    %v66 = vld [vmem:[#allocation2 + $0xf0] sm:$0xff]
    %v67 = vld [vmem:[#allocation2 + $0xf8] sm:$0xff]
    %v68 = vld [vmem:[%s2] sm:$0x3]
    %v70 = vlaneseq
    %v71 = vshrl.u32 %v70, 7
    %v72 = vsub.s32 0, %v71
    %v73 = vrot.slane %v68, %v72
    %v74 = vlaneseq
    %v75 = vshrl.u32 %v74, 7
    %v76 = vsub.s32 1, %v75
    %v77 = vrot.slane %v68, %v76
    %v82 = vunpack.c.l.b16 %v34
    %v83 = vunpack.c.h.b16 %v34
    %v84 = vunpack.c.l.b16 %v35
    %v85 = vunpack.c.h.b16 %v35
    %v86 = vpack.c.b16 %v84, %v82
    %v87 = vpack.c.b16 %v85, %v83
    %v122 = vunpack.c.l.b16 %v36
    %v123 = vunpack.c.h.b16 %v36
    %v124 = vunpack.c.l.b16 %v37
    %v125 = vunpack.c.h.b16 %v37
    %v126 = vunpack.c.l.b16 %v38
    %v127 = vunpack.c.h.b16 %v38
    %v128 = vunpack.c.l.b16 %v39
    %v129 = vunpack.c.h.b16 %v39
    %v130 = vunpack.c.l.b16 %v40
    %v131 = vunpack.c.h.b16 %v40
    %v132 = vunpack.c.l.b16 %v41
    %v133 = vunpack.c.h.b16 %v41
    %v134 = vunpack.c.l.b16 %v42
    %v135 = vunpack.c.h.b16 %v42
    %v136 = vunpack.c.l.b16 %v43
    %v137 = vunpack.c.h.b16 %v43
    %v138 = vunpack.c.l.b16 %v44
    %v139 = vunpack.c.h.b16 %v44
    %v140 = vunpack.c.l.b16 %v45
    %v141 = vunpack.c.h.b16 %v45
    %v142 = vunpack.c.l.b16 %v46
    %v143 = vunpack.c.h.b16 %v46
    %v144 = vunpack.c.l.b16 %v47
    %v145 = vunpack.c.h.b16 %v47
    %v146 = vunpack.c.l.b16 %v48
    %v147 = vunpack.c.h.b16 %v48
    %v148 = vunpack.c.l.b16 %v49
    %v149 = vunpack.c.h.b16 %v49
    %v150 = vunpack.c.l.b16 %v50
    %v151 = vunpack.c.h.b16 %v50
    %v152 = vunpack.c.l.b16 %v51
    %v153 = vunpack.c.h.b16 %v51
    %v154 = vunpack.c.l.b16 %v52
    %v155 = vunpack.c.h.b16 %v52
    %v156 = vunpack.c.l.b16 %v53
    %v157 = vunpack.c.h.b16 %v53
    %v158 = vunpack.c.l.b16 %v54
    %v159 = vunpack.c.h.b16 %v54
    %v160 = vunpack.c.l.b16 %v55
    %v161 = vunpack.c.h.b16 %v55
    %v162 = vunpack.c.l.b16 %v56
    %v163 = vunpack.c.h.b16 %v56
    %v164 = vunpack.c.l.b16 %v57
    %v165 = vunpack.c.h.b16 %v57
    %v166 = vunpack.c.l.b16 %v58
    %v167 = vunpack.c.h.b16 %v58
    %v168 = vunpack.c.l.b16 %v59
    %v169 = vunpack.c.h.b16 %v59
    %v170 = vunpack.c.l.b16 %v60
    %v171 = vunpack.c.h.b16 %v60
    %v172 = vunpack.c.l.b16 %v61
    %v173 = vunpack.c.h.b16 %v61
    %v174 = vunpack.c.l.b16 %v62
    %v175 = vunpack.c.h.b16 %v62
    %v176 = vunpack.c.l.b16 %v63
    %v177 = vunpack.c.h.b16 %v63
    %v178 = vunpack.c.l.b16 %v64
    %v179 = vunpack.c.h.b16 %v64
    %v180 = vunpack.c.l.b16 %v65
    %v181 = vunpack.c.h.b16 %v65
    %v182 = vunpack.c.l.b16 %v66
    %v183 = vunpack.c.h.b16 %v66
    %v184 = vunpack.c.l.b16 %v67
    %v185 = vunpack.c.h.b16 %v67
    %v186 = vpack.c.b16 %v124, %v122
    %v187 = vpack.c.b16 %v125, %v123
    %v188 = vpack.c.b16 %v128, %v126
    %v189 = vpack.c.b16 %v129, %v127
    %v190 = vpack.c.b16 %v132, %v130
    %v191 = vpack.c.b16 %v133, %v131
    %v192 = vpack.c.b16 %v136, %v134
    %v193 = vpack.c.b16 %v137, %v135
    %v194 = vpack.c.b16 %v140, %v138
    %v195 = vpack.c.b16 %v141, %v139
    %v196 = vpack.c.b16 %v144, %v142
    %v197 = vpack.c.b16 %v145, %v143
    %v198 = vpack.c.b16 %v148, %v146
    %v199 = vpack.c.b16 %v149, %v147
    %v200 = vpack.c.b16 %v152, %v150
    %v201 = vpack.c.b16 %v153, %v151
    %v202 = vpack.c.b16 %v156, %v154
    %v203 = vpack.c.b16 %v157, %v155
    %v204 = vpack.c.b16 %v160, %v158
    %v205 = vpack.c.b16 %v161, %v159
    %v206 = vpack.c.b16 %v164, %v162
    %v207 = vpack.c.b16 %v165, %v163
    %v208 = vpack.c.b16 %v168, %v166
    %v209 = vpack.c.b16 %v169, %v167
    %v210 = vpack.c.b16 %v172, %v170
    %v211 = vpack.c.b16 %v173, %v171
    %v212 = vpack.c.b16 %v176, %v174
    %v213 = vpack.c.b16 %v177, %v175
    %v214 = vpack.c.b16 %v180, %v178
    %v215 = vpack.c.b16 %v181, %v179
    %v216 = vpack.c.b16 %v184, %v182
    %v217 = vpack.c.b16 %v185, %v183
    %250 = vmatprep.subr.bf16.mxu0 %v187
    %251 = vmatpush1.bf16.msra.mxu0 %v186
    %252 = vmatprep.subr.bf16.mxu0 %v189
    %253 = vmatpush1.bf16.msra.mxu0 %v188
    %254 = vmatprep.subr.bf16.mxu0 %v191
    %255 = vmatpush1.bf16.msra.mxu0 %v190
    %256 = vmatprep.subr.bf16.mxu0 %v193
    %257 = vmatpush1.bf16.msra.mxu0 %v192
    %258 = vmatprep.subr.bf16.mxu0 %v195
    %259 = vmatpush1.bf16.msra.mxu0 %v194
    %260 = vmatprep.subr.bf16.mxu0 %v197
    %261 = vmatpush1.bf16.msra.mxu0 %v196
    %262 = vmatprep.subr.bf16.mxu0 %v199
    %263 = vmatpush1.bf16.msra.mxu0 %v198
    %264 = vmatprep.subr.bf16.mxu0 %v201
    %265 = vmatpush1.bf16.msra.mxu0 %v200
    %266 = vmatprep.subr.bf16.mxu0 %v203
    %267 = vmatpush1.bf16.msra.mxu0 %v202
    %268 = vmatprep.subr.bf16.mxu0 %v205
    %269 = vmatpush1.bf16.msra.mxu0 %v204
    %270 = vmatprep.subr.bf16.mxu0 %v207
    %271 = vmatpush1.bf16.msra.mxu0 %v206
    %272 = vmatprep.subr.bf16.mxu0 %v209
    %273 = vmatpush1.bf16.msra.mxu0 %v208
    %274 = vmatprep.subr.bf16.mxu0 %v211
    %275 = vmatpush1.bf16.msra.mxu0 %v210
    %276 = vmatprep.subr.bf16.mxu0 %v213
    %277 = vmatpush1.bf16.msra.mxu0 %v212
    %278 = vmatprep.subr.bf16.mxu0 %v215
    %279 = vmatpush1.bf16.msra.mxu0 %v214
    %280 = vmatprep.subr.bf16.mxu0 %v217
    %281 = vmatpush1.bf16.msra.mxu0 %v216
    %282 = vmatprep.mubr.bf16.mxu0 %v87
    %283 = vmatmul.mubr.bf16.gmra.mrb[0].mxu0 %v86
    %v284 = vpop.f32.mrb[0].mxu0
    %v285 = vadd.f32 %v73, %v284
    %v286 = vpop.f32.mrb[0].mxu0
    %v287 = vadd.f32 %v77, %v286
    %v288 = vpop.f32.mrb[0].mxu0
    %v289 = vadd.f32 %v73, %v288
    %v290 = vpop.f32.mrb[0].mxu0
    %v291 = vadd.f32 %v77, %v290
    %292 = vdwg.mxu0
    %v293 = vmax.f32 %v285, 0.0
    %v294 = vmax.f32 %v287, 0.0
    %v295 = vmax.f32 %v289, 0.0
    %v296 = vmax.f32 %v291, 0.0
    %v297 = vpack.c.bf16 %v295, %v293
    %v298 = vpack.c.bf16 %v296, %v294
    %v299 = vld [vmem:[%s3] sm:$0xff]
    %v300 = vld [vmem:[%s3 + $0x8] sm:$0xff]
    %v301 = vld [vmem:[%s3 + $0x10] sm:$0xff]
    %v302 = vld [vmem:[%s3 + $0x18] sm:$0xff]
    %v303 = vld [vmem:[%s3 + $0x20] sm:$0xff]
    %v304 = vld [vmem:[%s3 + $0x28] sm:$0xff]
    %v305 = vld [vmem:[%s3 + $0x30] sm:$0xff]
    %v306 = vld [vmem:[%s3 + $0x38] sm:$0xff]
    %v307 = vld [vmem:[%s3 + $0x40] sm:$0xff]
    %v308 = vld [vmem:[%s3 + $0x48] sm:$0xff]
    %v309 = vld [vmem:[%s3 + $0x50] sm:$0xff]
    %v310 = vld [vmem:[%s3 + $0x58] sm:$0xff]
    %v311 = vld [vmem:[%s3 + $0x60] sm:$0xff]
    %v312 = vld [vmem:[%s3 + $0x68] sm:$0xff]
    %v313 = vld [vmem:[%s3 + $0x70] sm:$0xff]
    %v314 = vld [vmem:[%s3 + $0x78] sm:$0xff]
    %v315 = vld [vmem:[%s3 + $0x80] sm:$0xff]
    %v316 = vld [vmem:[%s3 + $0x88] sm:$0xff]
    %v317 = vld [vmem:[%s3 + $0x90] sm:$0xff]
    %v318 = vld [vmem:[%s3 + $0x98] sm:$0xff]
    %v319 = vld [vmem:[%s3 + $0xa0] sm:$0xff]
    %v320 = vld [vmem:[%s3 + $0xa8] sm:$0xff]
    %v321 = vld [vmem:[%s3 + $0xb0] sm:$0xff]
    %v322 = vld [vmem:[%s3 + $0xb8] sm:$0xff]
    %v323 = vld [vmem:[%s3 + $0xc0] sm:$0xff]
    %v324 = vld [vmem:[%s3 + $0xc8] sm:$0xff]
    %v325 = vld [vmem:[%s3 + $0xd0] sm:$0xff]
    %v326 = vld [vmem:[%s3 + $0xd8] sm:$0xff]
    %v327 = vld [vmem:[%s3 + $0xe0] sm:$0xff]
    %v328 = vld [vmem:[%s3 + $0xe8] sm:$0xff]
    %v329 = vld [vmem:[%s3 + $0xf0] sm:$0xff]
    %v330 = vld [vmem:[%s3 + $0xf8] sm:$0xff]
    %v331 = vld [vmem:[%s3 + $0x100] sm:$0xff]
    %v332 = vld [vmem:[%s3 + $0x108] sm:$0xff]
    %v333 = vld [vmem:[%s3 + $0x110] sm:$0xff]
    %v334 = vld [vmem:[%s3 + $0x118] sm:$0xff]
    %v335 = vld [vmem:[%s3 + $0x120] sm:$0xff]
    %v336 = vld [vmem:[%s3 + $0x128] sm:$0xff]
    %v337 = vld [vmem:[%s3 + $0x130] sm:$0xff]
    %v338 = vld [vmem:[%s3 + $0x138] sm:$0xff]
    %v339 = vld [vmem:[%s3 + $0x140] sm:$0xff]
    %v340 = vld [vmem:[%s3 + $0x148] sm:$0xff]
    %v341 = vld [vmem:[%s3 + $0x150] sm:$0xff]
    %v342 = vld [vmem:[%s3 + $0x158] sm:$0xff]
    %v343 = vld [vmem:[%s3 + $0x160] sm:$0xff]
    %v344 = vld [vmem:[%s3 + $0x168] sm:$0xff]
    %v345 = vld [vmem:[%s3 + $0x170] sm:$0xff]
    %v346 = vld [vmem:[%s3 + $0x178] sm:$0xff]
    %v347 = vld [vmem:[%s3 + $0x180] sm:$0xff]
    %v348 = vld [vmem:[%s3 + $0x188] sm:$0xff]
    %v349 = vld [vmem:[%s3 + $0x190] sm:$0xff]
    %v350 = vld [vmem:[%s3 + $0x198] sm:$0xff]
    %v351 = vld [vmem:[%s3 + $0x1a0] sm:$0xff]
    %v352 = vld [vmem:[%s3 + $0x1a8] sm:$0xff]
    %v353 = vld [vmem:[%s3 + $0x1b0] sm:$0xff]
    %v354 = vld [vmem:[%s3 + $0x1b8] sm:$0xff]
    %v355 = vld [vmem:[%s3 + $0x1c0] sm:$0xff]
    %v356 = vld [vmem:[%s3 + $0x1c8] sm:$0xff]
    %v357 = vld [vmem:[%s3 + $0x1d0] sm:$0xff]
    %v358 = vld [vmem:[%s3 + $0x1d8] sm:$0xff]
    %v359 = vld [vmem:[%s3 + $0x1e0] sm:$0xff]
    %v360 = vld [vmem:[%s3 + $0x1e8] sm:$0xff]
    %v361 = vld [vmem:[%s3 + $0x1f0] sm:$0xff]
    %v362 = vld [vmem:[%s3 + $0x1f8] sm:$0xff]
    %v363 = vld [vmem:[%s4] sm:$0xf]
    %v365 = vlaneseq
    %v366 = vshrl.u32 %v365, 7
    %v367 = vsub.s32 0, %v366
    %v368 = vrot.slane %v363, %v367
    %v369 = vlaneseq
    %v370 = vshrl.u32 %v369, 7
    %v371 = vsub.s32 1, %v370
    %v372 = vrot.slane %v363, %v371
    %v373 = vlaneseq
    %v374 = vshrl.u32 %v373, 7
    %v375 = vsub.s32 2, %v374
    %v376 = vrot.slane %v363, %v375
    %v377 = vlaneseq
    %v378 = vshrl.u32 %v377, 7
    %v379 = vsub.s32 3, %v378
    %v380 = vrot.slane %v363, %v379
    %v449 = vunpack.c.l.b16 %v299
    %v450 = vunpack.c.h.b16 %v299
    %v451 = vunpack.c.l.b16 %v300
    %v452 = vunpack.c.h.b16 %v300
    %v453 = vunpack.c.l.b16 %v301
    %v454 = vunpack.c.h.b16 %v301
    %v455 = vunpack.c.l.b16 %v302
    %v456 = vunpack.c.h.b16 %v302
    %v457 = vunpack.c.l.b16 %v303
    %v458 = vunpack.c.h.b16 %v303
    %v459 = vunpack.c.l.b16 %v304
    %v460 = vunpack.c.h.b16 %v304
    %v461 = vunpack.c.l.b16 %v305
    %v462 = vunpack.c.h.b16 %v305
    %v463 = vunpack.c.l.b16 %v306
    %v464 = vunpack.c.h.b16 %v306
    %v465 = vunpack.c.l.b16 %v307
    %v466 = vunpack.c.h.b16 %v307
    %v467 = vunpack.c.l.b16 %v308
    %v468 = vunpack.c.h.b16 %v308
    %v469 = vunpack.c.l.b16 %v309
    %v470 = vunpack.c.h.b16 %v309
    %v471 = vunpack.c.l.b16 %v310
    %v472 = vunpack.c.h.b16 %v310
    %v473 = vunpack.c.l.b16 %v311
    %v474 = vunpack.c.h.b16 %v311
    %v475 = vunpack.c.l.b16 %v312
    %v476 = vunpack.c.h.b16 %v312
    %v477 = vunpack.c.l.b16 %v313
    %v478 = vunpack.c.h.b16 %v313
    %v479 = vunpack.c.l.b16 %v314
    %v480 = vunpack.c.h.b16 %v314
    %v481 = vunpack.c.l.b16 %v315
    %v482 = vunpack.c.h.b16 %v315
    %v483 = vunpack.c.l.b16 %v316
    %v484 = vunpack.c.h.b16 %v316
    %v485 = vunpack.c.l.b16 %v317
    %v486 = vunpack.c.h.b16 %v317
    %v487 = vunpack.c.l.b16 %v318
    %v488 = vunpack.c.h.b16 %v318
    %v489 = vunpack.c.l.b16 %v319
    %v490 = vunpack.c.h.b16 %v319
    %v491 = vunpack.c.l.b16 %v320
    %v492 = vunpack.c.h.b16 %v320
    %v493 = vunpack.c.l.b16 %v321
    %v494 = vunpack.c.h.b16 %v321
    %v495 = vunpack.c.l.b16 %v322
    %v496 = vunpack.c.h.b16 %v322
    %v497 = vunpack.c.l.b16 %v323
    %v498 = vunpack.c.h.b16 %v323
    %v499 = vunpack.c.l.b16 %v324
    %v500 = vunpack.c.h.b16 %v324
    %v501 = vunpack.c.l.b16 %v325
    %v502 = vunpack.c.h.b16 %v325
    %v503 = vunpack.c.l.b16 %v326
    %v504 = vunpack.c.h.b16 %v326
    %v505 = vunpack.c.l.b16 %v327
    %v506 = vunpack.c.h.b16 %v327
    %v507 = vunpack.c.l.b16 %v328
    %v508 = vunpack.c.h.b16 %v328
    %v509 = vunpack.c.l.b16 %v329
    %v510 = vunpack.c.h.b16 %v329
    %v511 = vunpack.c.l.b16 %v330
    %v512 = vunpack.c.h.b16 %v330
    %v513 = vunpack.c.l.b16 %v331
    %v514 = vunpack.c.h.b16 %v331
    %v515 = vunpack.c.l.b16 %v332
    %v516 = vunpack.c.h.b16 %v332
    %v517 = vunpack.c.l.b16 %v333
    %v518 = vunpack.c.h.b16 %v333
    %v519 = vunpack.c.l.b16 %v334
    %v520 = vunpack.c.h.b16 %v334
    %v521 = vunpack.c.l.b16 %v335
    %v522 = vunpack.c.h.b16 %v335
    %v523 = vunpack.c.l.b16 %v336
    %v524 = vunpack.c.h.b16 %v336
    %v525 = vunpack.c.l.b16 %v337
    %v526 = vunpack.c.h.b16 %v337
    %v527 = vunpack.c.l.b16 %v338
    %v528 = vunpack.c.h.b16 %v338
    %v529 = vunpack.c.l.b16 %v339
    %v530 = vunpack.c.h.b16 %v339
    %v531 = vunpack.c.l.b16 %v340
    %v532 = vunpack.c.h.b16 %v340
    %v533 = vunpack.c.l.b16 %v341
    %v534 = vunpack.c.h.b16 %v341
    %v535 = vunpack.c.l.b16 %v342
    %v536 = vunpack.c.h.b16 %v342
    %v537 = vunpack.c.l.b16 %v343
    %v538 = vunpack.c.h.b16 %v343
    %v539 = vunpack.c.l.b16 %v344
    %v540 = vunpack.c.h.b16 %v344
    %v541 = vunpack.c.l.b16 %v345
    %v542 = vunpack.c.h.b16 %v345
    %v543 = vunpack.c.l.b16 %v346
    %v544 = vunpack.c.h.b16 %v346
    %v545 = vunpack.c.l.b16 %v347
    %v546 = vunpack.c.h.b16 %v347
    %v547 = vunpack.c.l.b16 %v348
    %v548 = vunpack.c.h.b16 %v348
    %v549 = vunpack.c.l.b16 %v349
    %v550 = vunpack.c.h.b16 %v349
    %v551 = vunpack.c.l.b16 %v350
    %v552 = vunpack.c.h.b16 %v350
    %v553 = vunpack.c.l.b16 %v351
    %v554 = vunpack.c.h.b16 %v351
    %v555 = vunpack.c.l.b16 %v352
    %v556 = vunpack.c.h.b16 %v352
    %v557 = vunpack.c.l.b16 %v353
    %v558 = vunpack.c.h.b16 %v353
    %v559 = vunpack.c.l.b16 %v354
    %v560 = vunpack.c.h.b16 %v354
    %v561 = vunpack.c.l.b16 %v355
    %v562 = vunpack.c.h.b16 %v355
    %v563 = vunpack.c.l.b16 %v356
    %v564 = vunpack.c.h.b16 %v356
    %v565 = vunpack.c.l.b16 %v357
    %v566 = vunpack.c.h.b16 %v357
    %v567 = vunpack.c.l.b16 %v358
    %v568 = vunpack.c.h.b16 %v358
    %v569 = vunpack.c.l.b16 %v359
    %v570 = vunpack.c.h.b16 %v359
    %v571 = vunpack.c.l.b16 %v360
    %v572 = vunpack.c.h.b16 %v360
    %v573 = vunpack.c.l.b16 %v361
    %v574 = vunpack.c.h.b16 %v361
    %v575 = vunpack.c.l.b16 %v362
    %v576 = vunpack.c.h.b16 %v362
    %v577 = vpack.c.b16 %v453, %v449
    %v578 = vpack.c.b16 %v454, %v450
    %v579 = vpack.c.b16 %v455, %v451
    %v580 = vpack.c.b16 %v456, %v452
    %v581 = vpack.c.b16 %v461, %v457
    %v582 = vpack.c.b16 %v462, %v458
    %v583 = vpack.c.b16 %v463, %v459
    %v584 = vpack.c.b16 %v464, %v460
    %v585 = vpack.c.b16 %v469, %v465
    %v586 = vpack.c.b16 %v470, %v466
    %v587 = vpack.c.b16 %v471, %v467
    %v588 = vpack.c.b16 %v472, %v468
    %v589 = vpack.c.b16 %v477, %v473
    %v590 = vpack.c.b16 %v478, %v474
    %v591 = vpack.c.b16 %v479, %v475
    %v592 = vpack.c.b16 %v480, %v476
    %v593 = vpack.c.b16 %v485, %v481
    %v594 = vpack.c.b16 %v486, %v482
    %v595 = vpack.c.b16 %v487, %v483
    %v596 = vpack.c.b16 %v488, %v484
    %v597 = vpack.c.b16 %v493, %v489
    %v598 = vpack.c.b16 %v494, %v490
    %v599 = vpack.c.b16 %v495, %v491
    %v600 = vpack.c.b16 %v496, %v492
    %v601 = vpack.c.b16 %v501, %v497
    %v602 = vpack.c.b16 %v502, %v498
    %v603 = vpack.c.b16 %v503, %v499
    %v604 = vpack.c.b16 %v504, %v500
    %v605 = vpack.c.b16 %v509, %v505
    %v606 = vpack.c.b16 %v510, %v506
    %v607 = vpack.c.b16 %v511, %v507
    %v608 = vpack.c.b16 %v512, %v508
    %v609 = vpack.c.b16 %v517, %v513
    %v610 = vpack.c.b16 %v518, %v514
    %v611 = vpack.c.b16 %v519, %v515
    %v612 = vpack.c.b16 %v520, %v516
    %v613 = vpack.c.b16 %v525, %v521
    %v614 = vpack.c.b16 %v526, %v522
    %v615 = vpack.c.b16 %v527, %v523
    %v616 = vpack.c.b16 %v528, %v524
    %v617 = vpack.c.b16 %v533, %v529
    %v618 = vpack.c.b16 %v534, %v530
    %v619 = vpack.c.b16 %v535, %v531
    %v620 = vpack.c.b16 %v536, %v532
    %v621 = vpack.c.b16 %v541, %v537
    %v622 = vpack.c.b16 %v542, %v538
    %v623 = vpack.c.b16 %v543, %v539
    %v624 = vpack.c.b16 %v544, %v540
    %v625 = vpack.c.b16 %v549, %v545
    %v626 = vpack.c.b16 %v550, %v546
    %v627 = vpack.c.b16 %v551, %v547
    %v628 = vpack.c.b16 %v552, %v548
    %v629 = vpack.c.b16 %v557, %v553
    %v630 = vpack.c.b16 %v558, %v554
    %v631 = vpack.c.b16 %v559, %v555
    %v632 = vpack.c.b16 %v560, %v556
    %v633 = vpack.c.b16 %v565, %v561
    %v634 = vpack.c.b16 %v566, %v562
    %v635 = vpack.c.b16 %v567, %v563
    %v636 = vpack.c.b16 %v568, %v564
    %v637 = vpack.c.b16 %v573, %v569
    %v638 = vpack.c.b16 %v574, %v570
    %v639 = vpack.c.b16 %v575, %v571
    %v640 = vpack.c.b16 %v576, %v572
    %705 = vmatprep.subr.bf16.mxu0 %v578
    %706 = vmatpush1.bf16.msra.mxu0 %v577
    %707 = vmatprep.subr.bf16.mxu0 %v582
    %708 = vmatpush1.bf16.msra.mxu0 %v581
    %709 = vmatprep.subr.bf16.mxu0 %v586
    %710 = vmatpush1.bf16.msra.mxu0 %v585
    %711 = vmatprep.subr.bf16.mxu0 %v590
    %712 = vmatpush1.bf16.msra.mxu0 %v589
    %713 = vmatprep.subr.bf16.mxu0 %v594
    %714 = vmatpush1.bf16.msra.mxu0 %v593
    %715 = vmatprep.subr.bf16.mxu0 %v598
    %716 = vmatpush1.bf16.msra.mxu0 %v597
    %717 = vmatprep.subr.bf16.mxu0 %v602
    %718 = vmatpush1.bf16.msra.mxu0 %v601
    %719 = vmatprep.subr.bf16.mxu0 %v606
    %720 = vmatpush1.bf16.msra.mxu0 %v605
    %721 = vmatprep.subr.bf16.mxu0 %v610
    %722 = vmatpush1.bf16.msra.mxu0 %v609
    %723 = vmatprep.subr.bf16.mxu0 %v614
    %724 = vmatpush1.bf16.msra.mxu0 %v613
    %725 = vmatprep.subr.bf16.mxu0 %v618
    %726 = vmatpush1.bf16.msra.mxu0 %v617
    %727 = vmatprep.subr.bf16.mxu0 %v622
    %728 = vmatpush1.bf16.msra.mxu0 %v621
    %729 = vmatprep.subr.bf16.mxu0 %v626
    %730 = vmatpush1.bf16.msra.mxu0 %v625
    %731 = vmatprep.subr.bf16.mxu0 %v630
    %732 = vmatpush1.bf16.msra.mxu0 %v629
    %733 = vmatprep.subr.bf16.mxu0 %v634
    %734 = vmatpush1.bf16.msra.mxu0 %v633
    %735 = vmatprep.subr.bf16.mxu0 %v638
    %736 = vmatpush1.bf16.msra.mxu0 %v637
    %737 = vmatprep.mubr.bf16.mxu0 %v298
    %738 = vmatmul.mubr.bf16.gmra.mrb[0].mxu0 %v297
    %v739 = vpop.f32.mrb[0].mxu0
    %v740 = vadd.f32 %v368, %v739
    %v741 = vpop.f32.mrb[0].mxu0
    %v742 = vadd.f32 %v372, %v741
    %v743 = vpop.f32.mrb[0].mxu0
    %v744 = vadd.f32 %v368, %v743
    %v745 = vpop.f32.mrb[0].mxu0
    %v746 = vadd.f32 %v372, %v745
    %747 = vdwg.mxu0
    %748 = vmatprep.subr.bf16.mxu0 %v580
    %749 = vmatpush1.bf16.msra.mxu0 %v579
    %750 = vmatprep.subr.bf16.mxu0 %v584
    %751 = vmatpush1.bf16.msra.mxu0 %v583
    %752 = vmatprep.subr.bf16.mxu0 %v588
    %753 = vmatpush1.bf16.msra.mxu0 %v587
    %754 = vmatprep.subr.bf16.mxu0 %v592
    %755 = vmatpush1.bf16.msra.mxu0 %v591
    %756 = vmatprep.subr.bf16.mxu0 %v596
    %757 = vmatpush1.bf16.msra.mxu0 %v595
    %758 = vmatprep.subr.bf16.mxu0 %v600
    %759 = vmatpush1.bf16.msra.mxu0 %v599
    %760 = vmatprep.subr.bf16.mxu0 %v604
    %761 = vmatpush1.bf16.msra.mxu0 %v603
    %762 = vmatprep.subr.bf16.mxu0 %v608
    %763 = vmatpush1.bf16.msra.mxu0 %v607
    %764 = vmatprep.subr.bf16.mxu0 %v612
    %765 = vmatpush1.bf16.msra.mxu0 %v611
    %766 = vmatprep.subr.bf16.mxu0 %v616
    %767 = vmatpush1.bf16.msra.mxu0 %v615
    %768 = vmatprep.subr.bf16.mxu0 %v620
    %769 = vmatpush1.bf16.msra.mxu0 %v619
    %770 = vmatprep.subr.bf16.mxu0 %v624
    %771 = vmatpush1.bf16.msra.mxu0 %v623
    %772 = vmatprep.subr.bf16.mxu0 %v628
    %773 = vmatpush1.bf16.msra.mxu0 %v627
    %774 = vmatprep.subr.bf16.mxu0 %v632
    %775 = vmatpush1.bf16.msra.mxu0 %v631
    %776 = vmatprep.subr.bf16.mxu0 %v636
    %777 = vmatpush1.bf16.msra.mxu0 %v635
    %778 = vmatprep.subr.bf16.mxu0 %v640
    %779 = vmatpush1.bf16.msra.mxu0 %v639
    %780 = vmatprep.mubr.bf16.mxu0 %v298
    %781 = vmatmul.mubr.bf16.gmra.mrb[0].mxu0 %v297
    %v782 = vpop.f32.mrb[0].mxu0
    %v783 = vadd.f32 %v376, %v782
    %v784 = vpop.f32.mrb[0].mxu0
    %v785 = vadd.f32 %v380, %v784
    %v786 = vpop.f32.mrb[0].mxu0
    %v787 = vadd.f32 %v376, %v786
    %v788 = vpop.f32.mrb[0].mxu0
    %v789 = vadd.f32 %v380, %v788
    %790 = vdwg.mxu0
    %791 = vst [vmem:[%s5] sm:$0xff] %v740
    %792 = vst [vmem:[%s5 + $0x8] sm:$0xff] %v742
    %793 = vst [vmem:[%s5 + $0x10] sm:$0xff] %v783
    %794 = vst [vmem:[%s5 + $0x18] sm:$0xff] %v785
    %795 = vst [vmem:[%s5 + $0x20] sm:$0xff] %v744
    %796 = vst [vmem:[%s5 + $0x28] sm:$0xff] %v746
    %797 = vst [vmem:[%s5 + $0x30] sm:$0xff] %v787
    %798 = vst [vmem:[%s5 + $0x38] sm:$0xff] %v789
    // Predicated region
    $region26: #{bert_captioning_forward.1} parent=1 // pred_check
      _
    $region27: #{bert_captioning_forward.1} parent=1 // pred_check_branch
      %800 = sbr.rel (0) target = $region29
    $region28: #{bert_captioning_forward.1} parent=1 // pred_region
      _
    $region29: #{bert_captioning_forward.1} parent=1 // pred_fallthru
      _
    // Predicated region
    $region30: #{bert_captioning_forward.1} parent=1 // pred_check
      _
    $region31: #{bert_captioning_forward.1} parent=1 // pred_check_branch
      %802 = sbr.rel (0) target = $region33
    $region32: #{bert_captioning_forward.1} parent=1 // pred_region
      _
    $region33: #{bert_captioning_forward.1} parent=1 // pred_fallthru
      _
    %803 = vsyncpa [#allocation3], 1

</llo_original>
